<compile_context>
chip_gen: v5e
topology: v5e:2x2
jax: 0.10.0
libtpu: 0.0.40
codegen_flags: <defaults>
</compile_context>

<pallas_src>
import functools

import jax
import jax.numpy as jnp
from jax.experimental import pallas as pl
from jax.experimental.pallas import tpu as pltpu

NEG_SLOPE = 0.01  # torch.nn.LeakyReLU default negative_slope


def _leaky_relu(x):
    return jnp.where(x > 0, x, NEG_SLOPE * x)


def botrgcn1_kernel(des_ref, a_ref, w_ref, b_ref, out_ref, *,
                    des_size, emb, num_nodes):
    f32 = jnp.float32
    bf16 = jnp.bfloat16
    E = emb
    N = num_nodes

    # Static row offsets into the stacked (bf16) weight slab.
    o_w_in = des_size
    o_w_cat = des_size + E
    o_w_out1 = des_size + 4 * E
    o_w_out2 = des_size + 5 * E

    w_des = w_ref[0:o_w_in, :]            # (des_size, E)
    w_in = w_ref[o_w_in:o_w_cat, :]       # (E, E)
    w_cat = w_ref[o_w_cat:o_w_out1, :]    # (3E, E) = [w_root; w_r0; w_r1]
    w_out1 = w_ref[o_w_out1:o_w_out2, :]  # (E, E)
    w_out2 = w_ref[o_w_out2:o_w_out2 + E, :]  # (E, E) zero-padded from (E, 2)

    b_des = b_ref[0:1, :]
    b_in = b_ref[1:2, :]
    b_rgcn = b_ref[2:3, :]
    b_out1 = b_ref[3:4, :]
    b_out2 = b_ref[4:5, :]

    a = a_ref[...]  # (2N, N) bf16, row-normalized per relation

    def mm(x, w):
        # bf16 MXU operands, f32 accumulation.
        return jnp.dot(x.astype(bf16), w, preferred_element_type=f32)

    # 1) linear_relu_des: Linear(des_size, E) + LeakyReLU
    d = _leaky_relu(mm(des_ref[...], w_des) + b_des)

    # 2) linear_relu_input: Linear(E, E) + LeakyReLU
    x = _leaky_relu(mm(d, w_in) + b_in)

    # Hoist the (1,E)->(N,E) broadcast out of the two hops.
    b_rgcn_full = jnp.broadcast_to(b_rgcn, (N, E))

    def rgcn(h):
        # Mean-aggregated messages for both relations in ONE matmul,
        # then [h | m0 | m1] @ [w_root; w_r0; w_r1] in ONE matmul.
        h16 = h.astype(bf16)
        m = jnp.dot(a, h16, preferred_element_type=f32)        # (2N, E)
        hm = jnp.concatenate(
            [h16, m[:N].astype(bf16), m[N:].astype(bf16)], axis=-1)  # (N, 3E)
        return jnp.dot(hm, w_cat, preferred_element_type=f32) + b_rgcn_full

    # 3) rgcn -> dropout (identity in eval mode) -> rgcn (shared weights)
    x = rgcn(x)
    x = rgcn(x)

    # 4) linear_relu_output1: Linear(E, E) + LeakyReLU
    x = _leaky_relu(mm(x, w_out1) + b_out1)

    # 5) linear_output2: Linear(E, 2), computed lane-dense as (N, E);
    #    columns >= 2 are zero-padded and sliced off outside the kernel.
    out_ref[...] = mm(x, w_out2) + b_out2


def build_dense_adjacency(edge_index, edge_type, num_nodes, num_relations=2):
    """Dense, row-normalized adjacency per relation (mean aggregation),
    stacked as A_stack = [A_0; A_1] with shape (num_relations*N, N), bf16.

    A_r[v, u] = (# edges u->v of type r) / (total # type-r edges into v)
    so that A_r @ x == scatter_mean of source features onto targets.
    Call once per graph and cache the result (it is the steady-state input).
    """
    src, dst = edge_index[0], edge_index[1]
    adj = jnp.zeros((num_relations, num_nodes, num_nodes), jnp.float32)
    adj = adj.at[edge_type, dst, src].add(1.0)
    deg = adj.sum(axis=-1, keepdims=True)
    adj = adj / jnp.maximum(deg, 1.0)
    return adj.reshape(num_relations * num_nodes, num_nodes).astype(jnp.bfloat16)


def pack_params(params, emb):
    """Stack all weights into one bf16 row-slab and all biases into one f32
    slab, padding the final Linear(E, 2) to E lane-dense columns."""
    f32 = jnp.float32
    w_cat = jnp.concatenate(
        [params["w_root"], params["w_r0"], params["w_r1"]], axis=0)      # (3E, E)
    w_out2_pad = jnp.zeros((emb, emb), f32).at[:, :2].set(params["w_out2"])
    w_slab = jnp.concatenate(
        [params["w_des"], params["w_in"], w_cat, params["w_out1"], w_out2_pad],
        axis=0).astype(jnp.bfloat16)                                     # (des+6E, E)

    b_out2_pad = jnp.zeros((1, emb), f32).at[:, :2].set(params["b_out2"])
    b_slab = jnp.concatenate(
        [params["b_des"], params["b_in"], params["b_rgcn"], params["b_out1"],
         b_out2_pad], axis=0).astype(f32)                                # (5, E)
    return w_slab, b_slab


@jax.jit
def botrgcn1_forward(des, a_stack, w_slab, b_slab):
    num_nodes, des_size = des.shape
    emb = w_slab.shape[1]

    kernel = functools.partial(
        botrgcn1_kernel, des_size=des_size, emb=emb, num_nodes=num_nodes)

    vmem_spec = pl.BlockSpec(memory_space=pltpu.MemorySpace.VMEM)
    out = pl.pallas_call(
        kernel,
        out_shape=jax.ShapeDtypeStruct((num_nodes, emb), jnp.float32),
        in_specs=[vmem_spec] * 4,
        out_specs=vmem_spec,
        # TODO(synk): if num_nodes scales past ~1-2k, add a row-tile grid
        # (parallel) and block the A_stack @ h reduction to respect v7x's
        # 64 MiB VMEM and use both TensorCores.
    )(des, a_stack, w_slab, b_slab)
    return out[:, :2]


def botrgcn1_reference(des, edge_index, edge_type, params, num_nodes):
    """Pure-JAX f32 reference of the PyTorch forward (eval mode)."""
    a = build_dense_adjacency(edge_index, edge_type, num_nodes).astype(jnp.float32)
    a0, a1 = a[:num_nodes], a[num_nodes:]

    d = _leaky_relu(des @ params["w_des"] + params["b_des"])
    x = _leaky_relu(d @ params["w_in"] + params["b_in"])

    def rgcn(h):
        return (a0 @ h @ params["w_r0"] + a1 @ h @ params["w_r1"]
                + h @ params["w_root"] + params["b_rgcn"])

    x = rgcn(x)
    x = rgcn(x)
    x = _leaky_relu(x @ params["w_out1"] + params["b_out1"])
    return x @ params["w_out2"] + params["b_out2"]


def init_params(key, des_size, embedding_dimension):
    e = embedding_dimension
    ks = jax.random.split(key, 8)
    scale = 0.05

    def lin(k, fan_in, fan_out):
        kw, kb = jax.random.split(k)
        w = scale * jax.random.normal(kw, (fan_in, fan_out), jnp.float32)
        b = scale * jax.random.normal(kb, (1, fan_out), jnp.float32)
        return w, b

    w_des, b_des = lin(ks[0], des_size, e)
    w_in, b_in = lin(ks[1], e, e)
    w_out1, b_out1 = lin(ks[2], e, e)
    w_out2, b_out2 = lin(ks[3], e, 2)
    w_r0 = scale * jax.random.normal(ks[4], (e, e), jnp.float32)
    w_r1 = scale * jax.random.normal(ks[5], (e, e), jnp.float32)
    w_root = scale * jax.random.normal(ks[6], (e, e), jnp.float32)
    b_rgcn = scale * jax.random.normal(ks[7], (1, e), jnp.float32)

    return dict(
        w_des=w_des, b_des=b_des,
        w_in=w_in, b_in=b_in,
        w_r0=w_r0, w_r1=w_r1, w_root=w_root, b_rgcn=b_rgcn,
        w_out1=w_out1, b_out1=b_out1,
        w_out2=w_out2, b_out2=b_out2,
    )


if __name__ == "__main__":
    # Small shapes consistent with the module's forward.
    NUM_NODES = 64
    DES_SIZE = 256
    TWEET_SIZE = 256
    NUM_PROP_SIZE = 6
    CAT_PROP_SIZE = 11
    EMB = 128
    NUM_EDGES = 256

    key = jax.random.PRNGKey(0)
    k_des, k_tweet, k_num, k_cat, k_src, k_dst, k_etype, k_params = (
        jax.random.split(key, 8)
    )

    des = jax.random.normal(k_des, (NUM_NODES, DES_SIZE), jnp.float32)
    # Unused in the reference forward (those branches are commented out),
    # constructed only to mirror the module signature.
    tweet = jax.random.normal(k_tweet, (NUM_NODES, TWEET_SIZE), jnp.float32)
    num_prop = jax.random.normal(k_num, (NUM_NODES, NUM_PROP_SIZE), jnp.float32)
    cat_prop = jax.random.normal(k_cat, (NUM_NODES, CAT_PROP_SIZE), jnp.float32)

    src = jax.random.randint(k_src, (NUM_EDGES,), 0, NUM_NODES)
    dst = jax.random.randint(k_dst, (NUM_EDGES,), 0, NUM_NODES)
    edge_index = jnp.stack([src, dst], axis=0)  # [2, num_edges]
    edge_type = jax.random.randint(k_etype, (NUM_EDGES,), 0, 2)

    params = init_params(k_params, DES_SIZE, EMB)

    # Precompute graph- and parameter-dependent slabs ONCE (outside the
    # jitted hot path), then run the fused kernel.
    a_stack = build_dense_adjacency(edge_index, edge_type, NUM_NODES)
    w_slab, b_slab = pack_params(params, EMB)

    out = botrgcn1_forward(des, a_stack, w_slab, b_slab)
    out = jax.block_until_ready(out)
    assert out.shape == (NUM_NODES, 2) and out.dtype == jnp.float32

    # Validate against the f32 reference (relaxed tolerance for bf16 MXU ops).
    ref = botrgcn1_reference(des, edge_index, edge_type, params, NUM_NODES)
    ref = jax.block_until_ready(ref)
    assert jnp.allclose(out, ref, rtol=5e-2, atol=5e-2), (
        float(jnp.max(jnp.abs(out - ref))))

    print("KERNEL_OK")
</pallas_src>

<mosaic_0001>
module attributes {stable_mosaic.version = 11 : i64} {
  func.func @botrgcn1_kernel(%arg0: memref<64x256xf32, #tpu.memory_space<vmem>>, %arg1: memref<128x64xbf16, #tpu.memory_space<vmem>>, %arg2: memref<1024x128xbf16, #tpu.memory_space<vmem>>, %arg3: memref<5x128xf32, #tpu.memory_space<vmem>>, %arg4: memref<64x128xf32, #tpu.memory_space<vmem>>) attributes {dimension_semantics = [], scalar_prefetch = 0 : i64, scratch_operands = 0 : i64, tpu.core_type = #tpu.core_type<tc>} {
    %c0 = arith.constant 0 : index
    %c0_0 = arith.constant 0 : index
    %0 = vector.load %arg2[%c0, %c0_0] : memref<1024x128xbf16, #tpu.memory_space<vmem>>, vector<256x128xbf16>
    %c256 = arith.constant 256 : index
    %c0_1 = arith.constant 0 : index
    %1 = vector.load %arg2[%c256, %c0_1] : memref<1024x128xbf16, #tpu.memory_space<vmem>>, vector<128x128xbf16>
    %c384 = arith.constant 384 : index
    %c0_2 = arith.constant 0 : index
    %2 = vector.load %arg2[%c384, %c0_2] : memref<1024x128xbf16, #tpu.memory_space<vmem>>, vector<384x128xbf16>
    %c768 = arith.constant 768 : index
    %c0_3 = arith.constant 0 : index
    %3 = vector.load %arg2[%c768, %c0_3] : memref<1024x128xbf16, #tpu.memory_space<vmem>>, vector<128x128xbf16>
    %c896 = arith.constant 896 : index
    %c0_4 = arith.constant 0 : index
    %4 = vector.load %arg2[%c896, %c0_4] : memref<1024x128xbf16, #tpu.memory_space<vmem>>, vector<128x128xbf16>
    %c0_5 = arith.constant 0 : index
    %c0_6 = arith.constant 0 : index
    %5 = vector.load %arg3[%c0_5, %c0_6] : memref<5x128xf32, #tpu.memory_space<vmem>>, vector<1x128xf32>
    %c1 = arith.constant 1 : index
    %c0_7 = arith.constant 0 : index
    %6 = vector.load %arg3[%c1, %c0_7] : memref<5x128xf32, #tpu.memory_space<vmem>>, vector<1x128xf32>
    %c2 = arith.constant 2 : index
    %c0_8 = arith.constant 0 : index
    %7 = vector.load %arg3[%c2, %c0_8] : memref<5x128xf32, #tpu.memory_space<vmem>>, vector<1x128xf32>
    %c3 = arith.constant 3 : index
    %c0_9 = arith.constant 0 : index
    %8 = vector.load %arg3[%c3, %c0_9] : memref<5x128xf32, #tpu.memory_space<vmem>>, vector<1x128xf32>
    %c4 = arith.constant 4 : index
    %c0_10 = arith.constant 0 : index
    %9 = vector.load %arg3[%c4, %c0_10] : memref<5x128xf32, #tpu.memory_space<vmem>>, vector<1x128xf32>
    %c0_11 = arith.constant 0 : index
    %c0_12 = arith.constant 0 : index
    %10 = vector.load %arg1[%c0_11, %c0_12] : memref<128x64xbf16, #tpu.memory_space<vmem>>, vector<128x64xbf16>
    %c0_13 = arith.constant 0 : index
    %c0_14 = arith.constant 0 : index
    %11 = vector.load %arg0[%c0_13, %c0_14] : memref<64x256xf32, #tpu.memory_space<vmem>>, vector<64x256xf32>
    %12 = arith.truncf %11 : vector<64x256xf32> to vector<64x256xbf16>
    %cst = arith.constant dense<0.000000e+00> : vector<64x128xf32>
    %13 = tpu.matmul %12, %0, %cst {dimension_numbers = #tpu.dot_dimension_numbers<[1], [0], [0], [1], [0, 0, 1, 1], [], []>} : vector<64x256xbf16>, vector<256x128xbf16>, vector<64x128xf32> -> vector<64x128xf32>
    %14 = vector.broadcast %5 : vector<1x128xf32> to vector<64x128xf32>
    %15 = arith.addf %13, %14 : vector<64x128xf32>
    %cst_15 = arith.constant 0.000000e+00 : f32
    %16 = vector.broadcast %cst_15 : f32 to vector<64x128xf32>
    %17 = arith.cmpf ogt, %15, %16 : vector<64x128xf32>
    %cst_16 = arith.constant 0.00999999977 : f32
    %18 = vector.broadcast %cst_16 : f32 to vector<64x128xf32>
    %19 = arith.mulf %18, %15 : vector<64x128xf32>
    %20 = arith.select %17, %15, %19 : vector<64x128xi1>, vector<64x128xf32>
    %21 = arith.truncf %20 : vector<64x128xf32> to vector<64x128xbf16>
    %cst_17 = arith.constant dense<0.000000e+00> : vector<64x128xf32>
    %22 = tpu.matmul %21, %1, %cst_17 {dimension_numbers = #tpu.dot_dimension_numbers<[1], [0], [0], [1], [0, 0, 1, 1], [], []>} : vector<64x128xbf16>, vector<128x128xbf16>, vector<64x128xf32> -> vector<64x128xf32>
    %23 = vector.broadcast %6 : vector<1x128xf32> to vector<64x128xf32>
    %24 = arith.addf %22, %23 : vector<64x128xf32>
    %cst_18 = arith.constant 0.000000e+00 : f32
    %25 = vector.broadcast %cst_18 : f32 to vector<64x128xf32>
    %26 = arith.cmpf ogt, %24, %25 : vector<64x128xf32>
    %cst_19 = arith.constant 0.00999999977 : f32
    %27 = vector.broadcast %cst_19 : f32 to vector<64x128xf32>
    %28 = arith.mulf %27, %24 : vector<64x128xf32>
    %29 = arith.select %26, %24, %28 : vector<64x128xi1>, vector<64x128xf32>
    %30 = vector.shape_cast %7 : vector<1x128xf32> to vector<1x128xf32>
    %31 = vector.broadcast %30 : vector<1x128xf32> to vector<64x128xf32>
    %32 = arith.truncf %29 : vector<64x128xf32> to vector<64x128xbf16>
    %cst_20 = arith.constant dense<0.000000e+00> : vector<128x128xf32>
    %33 = tpu.matmul %10, %32, %cst_20 {dimension_numbers = #tpu.dot_dimension_numbers<[1], [0], [0], [1], [0, 0, 1, 1], [], []>} : vector<128x64xbf16>, vector<64x128xbf16>, vector<128x128xf32> -> vector<128x128xf32>
    %34 = vector.extract_strided_slice %33 {offsets = [0, 0], sizes = [64, 128], strides = [1, 1]} : vector<128x128xf32> to vector<64x128xf32>
    %35 = arith.truncf %34 : vector<64x128xf32> to vector<64x128xbf16>
    %36 = vector.extract_strided_slice %33 {offsets = [64, 0], sizes = [64, 128], strides = [1, 1]} : vector<128x128xf32> to vector<64x128xf32>
    %37 = arith.truncf %36 : vector<64x128xf32> to vector<64x128xbf16>
    %38 = tpu.concatenate %32, %35, %37 in 1 : vector<64x128xbf16>, vector<64x128xbf16>, vector<64x128xbf16> -> vector<64x384xbf16>
    %cst_21 = arith.constant dense<0.000000e+00> : vector<64x128xf32>
    %39 = tpu.matmul %38, %2, %cst_21 {dimension_numbers = #tpu.dot_dimension_numbers<[1], [0], [0], [1], [0, 0, 1, 1], [], []>} : vector<64x384xbf16>, vector<384x128xbf16>, vector<64x128xf32> -> vector<64x128xf32>
    %40 = arith.addf %39, %31 : vector<64x128xf32>
    %41 = arith.truncf %40 : vector<64x128xf32> to vector<64x128xbf16>
    %cst_22 = arith.constant dense<0.000000e+00> : vector<128x128xf32>
    %42 = tpu.matmul %10, %41, %cst_22 {dimension_numbers = #tpu.dot_dimension_numbers<[1], [0], [0], [1], [0, 0, 1, 1], [], []>} : vector<128x64xbf16>, vector<64x128xbf16>, vector<128x128xf32> -> vector<128x128xf32>
    %43 = vector.extract_strided_slice %42 {offsets = [0, 0], sizes = [64, 128], strides = [1, 1]} : vector<128x128xf32> to vector<64x128xf32>
    %44 = arith.truncf %43 : vector<64x128xf32> to vector<64x128xbf16>
    %45 = vector.extract_strided_slice %42 {offsets = [64, 0], sizes = [64, 128], strides = [1, 1]} : vector<128x128xf32> to vector<64x128xf32>
    %46 = arith.truncf %45 : vector<64x128xf32> to vector<64x128xbf16>
    %47 = tpu.concatenate %41, %44, %46 in 1 : vector<64x128xbf16>, vector<64x128xbf16>, vector<64x128xbf16> -> vector<64x384xbf16>
    %cst_23 = arith.constant dense<0.000000e+00> : vector<64x128xf32>
    %48 = tpu.matmul %47, %2, %cst_23 {dimension_numbers = #tpu.dot_dimension_numbers<[1], [0], [0], [1], [0, 0, 1, 1], [], []>} : vector<64x384xbf16>, vector<384x128xbf16>, vector<64x128xf32> -> vector<64x128xf32>
    %49 = arith.addf %48, %31 : vector<64x128xf32>
    %50 = arith.truncf %49 : vector<64x128xf32> to vector<64x128xbf16>
    %cst_24 = arith.constant dense<0.000000e+00> : vector<64x128xf32>
    %51 = tpu.matmul %50, %3, %cst_24 {dimension_numbers = #tpu.dot_dimension_numbers<[1], [0], [0], [1], [0, 0, 1, 1], [], []>} : vector<64x128xbf16>, vector<128x128xbf16>, vector<64x128xf32> -> vector<64x128xf32>
    %52 = vector.broadcast %8 : vector<1x128xf32> to vector<64x128xf32>
    %53 = arith.addf %51, %52 : vector<64x128xf32>
    %cst_25 = arith.constant 0.000000e+00 : f32
    %54 = vector.broadcast %cst_25 : f32 to vector<64x128xf32>
    %55 = arith.cmpf ogt, %53, %54 : vector<64x128xf32>
    %cst_26 = arith.constant 0.00999999977 : f32
    %56 = vector.broadcast %cst_26 : f32 to vector<64x128xf32>
    %57 = arith.mulf %56, %53 : vector<64x128xf32>
    %58 = arith.select %55, %53, %57 : vector<64x128xi1>, vector<64x128xf32>
    %59 = arith.truncf %58 : vector<64x128xf32> to vector<64x128xbf16>
    %cst_27 = arith.constant dense<0.000000e+00> : vector<64x128xf32>
    %60 = tpu.matmul %59, %4, %cst_27 {dimension_numbers = #tpu.dot_dimension_numbers<[1], [0], [0], [1], [0, 0, 1, 1], [], []>} : vector<64x128xbf16>, vector<128x128xbf16>, vector<64x128xf32> -> vector<64x128xf32>
    %61 = vector.broadcast %9 : vector<1x128xf32> to vector<64x128xf32>
    %62 = arith.addf %60, %61 : vector<64x128xf32>
    %c0_28 = arith.constant 0 : index
    %c0_29 = arith.constant 0 : index
    %63 = vector.load %arg4[%c0_28, %c0_29] : memref<64x128xf32, #tpu.memory_space<vmem>>, vector<64x128xf32>
    tpu.vector_store %arg4[%c0_28, %c0_29], %62 {strides = array<i32>} : memref<64x128xf32, #tpu.memory_space<vmem>>, vector<64x128xf32>,
    return
  }
}

</mosaic_0001>

<llo_original>
// kernel: botrgcn1_forward.1
$region0: #{botrgcn1_forward.1}
  #allocation0 [shape = 'u32[]', space=smem, size = 0x4, offset = 0x4, fixed_abs, tag = 'smem constant byte address 0x4 - core index']
  #allocation1 [shape = 'u32[72,128]{1,0:T(1,128)}', space=vmem, size = 0x9000, scoped, tag = 'internal scratch']
  %s0 = inlined_call_operand.hbm [shape: f32[64,256], index: 0, kind: input, shape index: {}]
  %s1 = inlined_call_operand.vmem [shape: bf16[128,64], index: 1, kind: input, shape index: {}]
  %s2 = inlined_call_operand.hbm [shape: bf16[1024,128], index: 2, kind: input, shape index: {}]
  %s3 = inlined_call_operand.vmem [shape: f32[5,128], index: 3, kind: input, shape index: {}]
  %s4 = inlined_call_operand.vmem [shape: f32[64,128], index: 4, kind: output, shape index: {}]
  %s5 = sld [smem:[#allocation0]]
  $region34: #{botrgcn1_forward.1} parent=0
    _
  %s7 = ssub.s32 1, %s5
  %s8 = scalar_select 0, %s7, %s5
  $region1: #{botrgcn1_forward.1} parent=0
    #allocation2 [shape = 'u8[65536]{0}', space=vmem, size = 0x10000, scoped, tag = 'input window, operand 0, single buffered']
    #allocation3 [shape = 's32[1]{0}', space=sflag, size = 0x4, scoped, tag = 'scoped memory for botrgcn1_forward.1']
    #allocation4 [shape = 'u8[262144]{0}', space=vmem, size = 0x40000, scoped, tag = 'input window, operand 2, single buffered']
    #allocation5 [shape = 's32[1]{0}', space=sflag, size = 0x4, scoped, tag = 'scoped memory for botrgcn1_forward.1']
    %9 = vsyncpa [#allocation3], 0
    %10 = vsyncpa [#allocation5], 0
    // Predicated region
    $region2: #{botrgcn1_forward.1} parent=1 // pred_check
      _
    $region3: #{botrgcn1_forward.1} parent=1 // pred_check_branch
      %12 = sbr.rel (0) target = $region5
    $region4: #{botrgcn1_forward.1} parent=1 // pred_region
      %14 = vsyncadd [#allocation3], 0
      %s15 = sshll.u32 %s0, 4
      %s16 = int_to_ptr.hbm [resolvable:$true] %s15
      %s17 = sshll.u32 [#allocation2], 4
      %s18 = int_to_ptr.vmem [resolvable:$true] %s17
      %23 = dma.hbm_to_vmem [thread:$0]  %s16, 2048, %s18, [#allocation3], 256, 256, 16
    $region5: #{botrgcn1_forward.1} parent=1 // pred_fallthru
      _
    // Predicated region
    $region6: #{botrgcn1_forward.1} parent=1 // pred_check
      _
    $region7: #{botrgcn1_forward.1} parent=1 // pred_check_branch
      %25 = sbr.rel (0) target = $region9
    $region8: #{botrgcn1_forward.1} parent=1 // pred_region
      _
    $region9: #{botrgcn1_forward.1} parent=1 // pred_fallthru
      _
    // Predicated region
    $region10: #{botrgcn1_forward.1} parent=1 // pred_check
      _
    $region11: #{botrgcn1_forward.1} parent=1 // pred_check_branch
      %27 = sbr.rel (0) target = $region13
    $region12: #{botrgcn1_forward.1} parent=1 // pred_region
      %29 = vsyncadd [#allocation5], 0
      %s30 = sshll.u32 %s2, 4
      %s31 = int_to_ptr.hbm [resolvable:$true] %s30
      %s32 = sshll.u32 [#allocation4], 4
      %s33 = int_to_ptr.vmem [resolvable:$true] %s32
      %38 = dma.hbm_to_vmem [thread:$0]  %s31, 8192, %s33, [#allocation5], 64, 64, 4
    $region13: #{botrgcn1_forward.1} parent=1 // pred_fallthru
      _
    // Predicated region
    $region14: #{botrgcn1_forward.1} parent=1 // pred_check
      _
    $region15: #{botrgcn1_forward.1} parent=1 // pred_check_branch
      %40 = sbr.rel (0) target = $region17
    $region16: #{botrgcn1_forward.1} parent=1 // pred_region
      _
    $region17: #{botrgcn1_forward.1} parent=1 // pred_fallthru
      _
    // Predicated region
    $region18: #{botrgcn1_forward.1} parent=1 // pred_check
      _
    $region19: #{botrgcn1_forward.1} parent=1 // pred_check_branch
      %42 = sbr.rel (0) target = $region21
    $region20: #{botrgcn1_forward.1} parent=1 // pred_region
      %44 = dma.done [#allocation3], 2048
    $region21: #{botrgcn1_forward.1} parent=1 // pred_fallthru
      _
    // Predicated region
    $region22: #{botrgcn1_forward.1} parent=1 // pred_check
      _
    $region23: #{botrgcn1_forward.1} parent=1 // pred_check_branch
      %46 = sbr.rel (0) target = $region25
    $region24: #{botrgcn1_forward.1} parent=1 // pred_region
      %48 = dma.done [#allocation5], 8192
    $region25: #{botrgcn1_forward.1} parent=1 // pred_fallthru
      _
    %v50 = vld [vmem:[#allocation4] sm:$0xf]
    %v51 = vld [vmem:[#allocation4 + $0x4] sm:$0xf]
    %v52 = vld [vmem:[#allocation4 + $0x8] sm:$0xf]
    %v53 = vld [vmem:[#allocation4 + $0xc] sm:$0xf]
    %v54 = vld [vmem:[#allocation4 + $0x10] sm:$0xf]
    %v55 = vld [vmem:[#allocation4 + $0x14] sm:$0xf]
    %v56 = vld [vmem:[#allocation4 + $0x18] sm:$0xf]
    %v57 = vld [vmem:[#allocation4 + $0x1c] sm:$0xf]
    %v58 = vld [vmem:[#allocation4 + $0x20] sm:$0xf]
    %v59 = vld [vmem:[#allocation4 + $0x24] sm:$0xf]
    %v60 = vld [vmem:[#allocation4 + $0x28] sm:$0xf]
    %v61 = vld [vmem:[#allocation4 + $0x2c] sm:$0xf]
    %v62 = vld [vmem:[#allocation4 + $0x30] sm:$0xf]
    %v63 = vld [vmem:[#allocation4 + $0x34] sm:$0xf]
    %v64 = vld [vmem:[#allocation4 + $0x38] sm:$0xf]
    %v65 = vld [vmem:[#allocation4 + $0x3c] sm:$0xf]
    %v66 = vld [vmem:[#allocation4 + $0x40] sm:$0xf]
    %v67 = vld [vmem:[#allocation4 + $0x44] sm:$0xf]
    %v68 = vld [vmem:[#allocation4 + $0x48] sm:$0xf]
    %v69 = vld [vmem:[#allocation4 + $0x4c] sm:$0xf]
    %v70 = vld [vmem:[#allocation4 + $0x50] sm:$0xf]
    %v71 = vld [vmem:[#allocation4 + $0x54] sm:$0xf]
    %v72 = vld [vmem:[#allocation4 + $0x58] sm:$0xf]
    %v73 = vld [vmem:[#allocation4 + $0x5c] sm:$0xf]
    %v74 = vld [vmem:[#allocation4 + $0x60] sm:$0xf]
    %v75 = vld [vmem:[#allocation4 + $0x64] sm:$0xf]
    %v76 = vld [vmem:[#allocation4 + $0x68] sm:$0xf]
    %v77 = vld [vmem:[#allocation4 + $0x6c] sm:$0xf]
    %v78 = vld [vmem:[#allocation4 + $0x70] sm:$0xf]
    %v79 = vld [vmem:[#allocation4 + $0x74] sm:$0xf]
    %v80 = vld [vmem:[#allocation4 + $0x78] sm:$0xf]
    %v81 = vld [vmem:[#allocation4 + $0x7c] sm:$0xf]
    %v82 = vld [vmem:[#allocation4 + $0x80] sm:$0xf]
    %v83 = vld [vmem:[#allocation4 + $0x84] sm:$0xf]
    %v84 = vld [vmem:[#allocation4 + $0x88] sm:$0xf]
    %v85 = vld [vmem:[#allocation4 + $0x8c] sm:$0xf]
    %v86 = vld [vmem:[#allocation4 + $0x90] sm:$0xf]
    %v87 = vld [vmem:[#allocation4 + $0x94] sm:$0xf]
    %v88 = vld [vmem:[#allocation4 + $0x98] sm:$0xf]
    %v89 = vld [vmem:[#allocation4 + $0x9c] sm:$0xf]
    %v90 = vld [vmem:[#allocation4 + $0xa0] sm:$0xf]
    %v91 = vld [vmem:[#allocation4 + $0xa4] sm:$0xf]
    %v92 = vld [vmem:[#allocation4 + $0xa8] sm:$0xf]
    %v93 = vld [vmem:[#allocation4 + $0xac] sm:$0xf]
    %v94 = vld [vmem:[#allocation4 + $0xb0] sm:$0xf]
    %v95 = vld [vmem:[#allocation4 + $0xb4] sm:$0xf]
    %v96 = vld [vmem:[#allocation4 + $0xb8] sm:$0xf]
    %v97 = vld [vmem:[#allocation4 + $0xbc] sm:$0xf]
    %v98 = vld [vmem:[#allocation4 + $0xc0] sm:$0xf]
    %v99 = vld [vmem:[#allocation4 + $0xc4] sm:$0xf]
    %v100 = vld [vmem:[#allocation4 + $0xc8] sm:$0xf]
    %v101 = vld [vmem:[#allocation4 + $0xcc] sm:$0xf]
    %v102 = vld [vmem:[#allocation4 + $0xd0] sm:$0xf]
    %v103 = vld [vmem:[#allocation4 + $0xd4] sm:$0xf]
    %v104 = vld [vmem:[#allocation4 + $0xd8] sm:$0xf]
    %v105 = vld [vmem:[#allocation4 + $0xdc] sm:$0xf]
    %v106 = vld [vmem:[#allocation4 + $0xe0] sm:$0xf]
    %v107 = vld [vmem:[#allocation4 + $0xe4] sm:$0xf]
    %v108 = vld [vmem:[#allocation4 + $0xe8] sm:$0xf]
    %v109 = vld [vmem:[#allocation4 + $0xec] sm:$0xf]
    %v110 = vld [vmem:[#allocation4 + $0xf0] sm:$0xf]
    %v111 = vld [vmem:[#allocation4 + $0xf4] sm:$0xf]
    %v112 = vld [vmem:[#allocation4 + $0xf8] sm:$0xf]
    %v113 = vld [vmem:[#allocation4 + $0xfc] sm:$0xf]
    %v114 = vld [vmem:[#allocation4 + $0x100] sm:$0xf]
    %v115 = vld [vmem:[#allocation4 + $0x104] sm:$0xf]
    %v116 = vld [vmem:[#allocation4 + $0x108] sm:$0xf]
    %v117 = vld [vmem:[#allocation4 + $0x10c] sm:$0xf]
    %v118 = vld [vmem:[#allocation4 + $0x110] sm:$0xf]
    %v119 = vld [vmem:[#allocation4 + $0x114] sm:$0xf]
    %v120 = vld [vmem:[#allocation4 + $0x118] sm:$0xf]
    %v121 = vld [vmem:[#allocation4 + $0x11c] sm:$0xf]
    %v122 = vld [vmem:[#allocation4 + $0x120] sm:$0xf]
    %v123 = vld [vmem:[#allocation4 + $0x124] sm:$0xf]
    %v124 = vld [vmem:[#allocation4 + $0x128] sm:$0xf]
    %v125 = vld [vmem:[#allocation4 + $0x12c] sm:$0xf]
    %v126 = vld [vmem:[#allocation4 + $0x130] sm:$0xf]
    %v127 = vld [vmem:[#allocation4 + $0x134] sm:$0xf]
    %v128 = vld [vmem:[#allocation4 + $0x138] sm:$0xf]
    %v129 = vld [vmem:[#allocation4 + $0x13c] sm:$0xf]
    %v130 = vld [vmem:[#allocation4 + $0x140] sm:$0xf]
    %v131 = vld [vmem:[#allocation4 + $0x144] sm:$0xf]
    %v132 = vld [vmem:[#allocation4 + $0x148] sm:$0xf]
    %v133 = vld [vmem:[#allocation4 + $0x14c] sm:$0xf]
    %v134 = vld [vmem:[#allocation4 + $0x150] sm:$0xf]
    %v135 = vld [vmem:[#allocation4 + $0x154] sm:$0xf]
    %v136 = vld [vmem:[#allocation4 + $0x158] sm:$0xf]
    %v137 = vld [vmem:[#allocation4 + $0x15c] sm:$0xf]
    %v138 = vld [vmem:[#allocation4 + $0x160] sm:$0xf]
    %v139 = vld [vmem:[#allocation4 + $0x164] sm:$0xf]
    %v140 = vld [vmem:[#allocation4 + $0x168] sm:$0xf]
    %v141 = vld [vmem:[#allocation4 + $0x16c] sm:$0xf]
    %v142 = vld [vmem:[#allocation4 + $0x170] sm:$0xf]
    %v143 = vld [vmem:[#allocation4 + $0x174] sm:$0xf]
    %v144 = vld [vmem:[#allocation4 + $0x178] sm:$0xf]
    %v145 = vld [vmem:[#allocation4 + $0x17c] sm:$0xf]
    %v146 = vld [vmem:[#allocation4 + $0x180] sm:$0xf]
    %v147 = vld [vmem:[#allocation4 + $0x184] sm:$0xf]
    %v148 = vld [vmem:[#allocation4 + $0x188] sm:$0xf]
    %v149 = vld [vmem:[#allocation4 + $0x18c] sm:$0xf]
    %v150 = vld [vmem:[#allocation4 + $0x190] sm:$0xf]
    %v151 = vld [vmem:[#allocation4 + $0x194] sm:$0xf]
    %v152 = vld [vmem:[#allocation4 + $0x198] sm:$0xf]
    %v153 = vld [vmem:[#allocation4 + $0x19c] sm:$0xf]
    %v154 = vld [vmem:[#allocation4 + $0x1a0] sm:$0xf]
    %v155 = vld [vmem:[#allocation4 + $0x1a4] sm:$0xf]
    %v156 = vld [vmem:[#allocation4 + $0x1a8] sm:$0xf]
    %v157 = vld [vmem:[#allocation4 + $0x1ac] sm:$0xf]
    %v158 = vld [vmem:[#allocation4 + $0x1b0] sm:$0xf]
    %v159 = vld [vmem:[#allocation4 + $0x1b4] sm:$0xf]
    %v160 = vld [vmem:[#allocation4 + $0x1b8] sm:$0xf]
    %v161 = vld [vmem:[#allocation4 + $0x1bc] sm:$0xf]
    %v162 = vld [vmem:[#allocation4 + $0x1c0] sm:$0xf]
    %v163 = vld [vmem:[#allocation4 + $0x1c4] sm:$0xf]
    %v164 = vld [vmem:[#allocation4 + $0x1c8] sm:$0xf]
    %v165 = vld [vmem:[#allocation4 + $0x1cc] sm:$0xf]
    %v166 = vld [vmem:[#allocation4 + $0x1d0] sm:$0xf]
    %v167 = vld [vmem:[#allocation4 + $0x1d4] sm:$0xf]
    %v168 = vld [vmem:[#allocation4 + $0x1d8] sm:$0xf]
    %v169 = vld [vmem:[#allocation4 + $0x1dc] sm:$0xf]
    %v170 = vld [vmem:[#allocation4 + $0x1e0] sm:$0xf]
    %v171 = vld [vmem:[#allocation4 + $0x1e4] sm:$0xf]
    %v172 = vld [vmem:[#allocation4 + $0x1e8] sm:$0xf]
    %v173 = vld [vmem:[#allocation4 + $0x1ec] sm:$0xf]
    %v174 = vld [vmem:[#allocation4 + $0x1f0] sm:$0xf]
    %v175 = vld [vmem:[#allocation4 + $0x1f4] sm:$0xf]
    %v176 = vld [vmem:[#allocation4 + $0x1f8] sm:$0xf]
    %v177 = vld [vmem:[#allocation4 + $0x1fc] sm:$0xf]
    %v178 = vld [vmem:[%s3] sm:$0x1]
    %v179 = vld [vmem:[%s3 + $0x1] sm:$0x1]
    %v180 = vld [vmem:[%s3 + $0x2] sm:$0x1]
    %v181 = vld [vmem:[%s3 + $0x3] sm:$0x1]
    %v182 = vld [vmem:[%s3 + $0x4] sm:$0x1]
    %v183 = vld [vmem:[%s1] sm:$0xf]
    %v184 = vld [vmem:[%s1 + $0x4] sm:$0xf]
    %v185 = vld [vmem:[%s1 + $0x8] sm:$0xf]
    %v186 = vld [vmem:[%s1 + $0xc] sm:$0xf]
    %v187 = vld [vmem:[%s1 + $0x10] sm:$0xf]
    %v188 = vld [vmem:[%s1 + $0x14] sm:$0xf]
    %v189 = vld [vmem:[%s1 + $0x18] sm:$0xf]
    %v190 = vld [vmem:[%s1 + $0x1c] sm:$0xf]
    %v191 = vld [vmem:[%s1 + $0x20] sm:$0xf]
    %v192 = vld [vmem:[%s1 + $0x24] sm:$0xf]
    %v193 = vld [vmem:[%s1 + $0x28] sm:$0xf]
    %v194 = vld [vmem:[%s1 + $0x2c] sm:$0xf]
    %v195 = vld [vmem:[%s1 + $0x30] sm:$0xf]
    %v196 = vld [vmem:[%s1 + $0x34] sm:$0xf]
    %v197 = vld [vmem:[%s1 + $0x38] sm:$0xf]
    %v198 = vld [vmem:[%s1 + $0x3c] sm:$0xf]
    %v199 = vld [vmem:[#allocation2] sm:$0xff]
    %v200 = vld [vmem:[#allocation2 + $0x8] sm:$0xff]
    %v201 = vld [vmem:[#allocation2 + $0x10] sm:$0xff]
    %v202 = vld [vmem:[#allocation2 + $0x18] sm:$0xff]
    %v203 = vld [vmem:[#allocation2 + $0x20] sm:$0xff]
    %v204 = vld [vmem:[#allocation2 + $0x28] sm:$0xff]
    %v205 = vld [vmem:[#allocation2 + $0x30] sm:$0xff]
    %v206 = vld [vmem:[#allocation2 + $0x38] sm:$0xff]
    %v207 = vld [vmem:[#allocation2 + $0x40] sm:$0xff]
    %v208 = vld [vmem:[#allocation2 + $0x48] sm:$0xff]
    %v209 = vld [vmem:[#allocation2 + $0x50] sm:$0xff]
    %v210 = vld [vmem:[#allocation2 + $0x58] sm:$0xff]
    %v211 = vld [vmem:[#allocation2 + $0x60] sm:$0xff]
    %v212 = vld [vmem:[#allocation2 + $0x68] sm:$0xff]
    %v213 = vld [vmem:[#allocation2 + $0x70] sm:$0xff]
    %v214 = vld [vmem:[#allocation2 + $0x78] sm:$0xff]
    %v215 = vpack.c.bf16 %v201, %v199
    %v216 = vpack.c.bf16 %v202, %v200
    %v217 = vpack.c.bf16 %v205, %v203
    %v218 = vpack.c.bf16 %v206, %v204
    %v219 = vpack.c.bf16 %v209, %v207
    %v220 = vpack.c.bf16 %v210, %v208
    %v221 = vpack.c.bf16 %v213, %v211
    %v222 = vpack.c.bf16 %v214, %v212
    %v223 = vperm.slane %v178, 0
    %v256 = vunpack.c.l.b16 %v50
    %v257 = vunpack.c.l.b16 %v51
    %v258 = vunpack.c.l.b16 %v52
    %v259 = vunpack.c.l.b16 %v53
    %v260 = vunpack.c.l.b16 %v54
    %v261 = vunpack.c.l.b16 %v55
    %v262 = vunpack.c.l.b16 %v56
    %v263 = vunpack.c.l.b16 %v57
    %v264 = vunpack.c.l.b16 %v58
    %v265 = vunpack.c.l.b16 %v59
    %v266 = vunpack.c.l.b16 %v60
    %v267 = vunpack.c.l.b16 %v61
    %v268 = vunpack.c.l.b16 %v62
    %v269 = vunpack.c.l.b16 %v63
    %v270 = vunpack.c.l.b16 %v64
    %v271 = vunpack.c.l.b16 %v65
    %v272 = vunpack.c.l.b16 %v66
    %v273 = vunpack.c.l.b16 %v67
    %v274 = vunpack.c.l.b16 %v68
    %v275 = vunpack.c.l.b16 %v69
    %v276 = vunpack.c.l.b16 %v70
    %v277 = vunpack.c.l.b16 %v71
    %v278 = vunpack.c.l.b16 %v72
    %v279 = vunpack.c.l.b16 %v73
    %v280 = vunpack.c.l.b16 %v74
    %v281 = vunpack.c.l.b16 %v75
    %v282 = vunpack.c.l.b16 %v76
    %v283 = vunpack.c.l.b16 %v77
    %v284 = vunpack.c.l.b16 %v78
    %v285 = vunpack.c.l.b16 %v79
    %v286 = vunpack.c.l.b16 %v80
    %v287 = vunpack.c.l.b16 %v81
    %v288 = vpack.c.b16 %v257, %v256
    %v289 = vpack.c.b16 %v259, %v258
    %v290 = vpack.c.b16 %v261, %v260
    %v291 = vpack.c.b16 %v263, %v262
    %v292 = vpack.c.b16 %v265, %v264
    %v293 = vpack.c.b16 %v267, %v266
    %v294 = vpack.c.b16 %v269, %v268
    %v295 = vpack.c.b16 %v271, %v270
    %v296 = vpack.c.b16 %v273, %v272
    %v297 = vpack.c.b16 %v275, %v274
    %v298 = vpack.c.b16 %v277, %v276
    %v299 = vpack.c.b16 %v279, %v278
    %v300 = vpack.c.b16 %v281, %v280
    %v301 = vpack.c.b16 %v283, %v282
    %v302 = vpack.c.b16 %v285, %v284
    %v303 = vpack.c.b16 %v287, %v286
    %320 = vmatpush.bf16.msra.mxu0 %v295
    %321 = vmatpush.bf16.msra.mxu0 %v294
    %322 = vmatpush.bf16.msra.mxu0 %v293
    %323 = vmatpush.bf16.msra.mxu0 %v292
    %324 = vmatpush.bf16.msra.mxu0 %v291
    %325 = vmatpush.bf16.msra.mxu0 %v290
    %326 = vmatpush.bf16.msra.mxu0 %v289
    %327 = vmatpush.bf16.msra.mxu0 %v288
    %328 = vmatmul.bf16.gmra.mxu0 %v215
    %v329 = vpop.f32.mrf.mxu0
    %v330 = vadd.f32 %v223, %v329
    %v331 = vpop.f32.mrf.mxu0
    %v332 = vadd.f32 %v223, %v331
    %333 = vmatmul.bf16.gmra.mxu0 %v217
    %v334 = vpop.f32.mrf.mxu0
    %v335 = vadd.f32 %v223, %v334
    %v336 = vpop.f32.mrf.mxu0
    %v337 = vadd.f32 %v223, %v336
    %338 = vmatmul.bf16.gmra.mxu0 %v219
    %v339 = vpop.f32.mrf.mxu0
    %v340 = vadd.f32 %v223, %v339
    %v341 = vpop.f32.mrf.mxu0
    %v342 = vadd.f32 %v223, %v341
    %343 = vmatmul.bf16.gmra.mxu0 %v221
    %v344 = vpop.f32.mrf.mxu0
    %v345 = vadd.f32 %v223, %v344
    %v346 = vpop.f32.mrf.mxu0
    %v347 = vadd.f32 %v223, %v346
    %348 = vdwg.mxu0
    %349 = vmatpush.bf16.msra.mxu0 %v303
    %350 = vmatpush.bf16.msra.mxu0 %v302
    %351 = vmatpush.bf16.msra.mxu0 %v301
    %352 = vmatpush.bf16.msra.mxu0 %v300
    %353 = vmatpush.bf16.msra.mxu0 %v299
    %354 = vmatpush.bf16.msra.mxu0 %v298
    %355 = vmatpush.bf16.msra.mxu0 %v297
    %356 = vmatpush.bf16.msra.mxu0 %v296
    %357 = vmatmul.bf16.gmra.mxu0 %v216
    %v358 = vpop.f32.mrf.mxu0
    %v359 = vadd.f32 %v330, %v358
    %v360 = vpop.f32.mrf.mxu0
    %v361 = vadd.f32 %v332, %v360
    %362 = vmatmul.bf16.gmra.mxu0 %v218
    %v363 = vpop.f32.mrf.mxu0
    %v364 = vadd.f32 %v335, %v363
    %v365 = vpop.f32.mrf.mxu0
    %v366 = vadd.f32 %v337, %v365
    %367 = vmatmul.bf16.gmra.mxu0 %v220
    %v368 = vpop.f32.mrf.mxu0
    %v369 = vadd.f32 %v340, %v368
    %v370 = vpop.f32.mrf.mxu0
    %v371 = vadd.f32 %v342, %v370
    %372 = vmatmul.bf16.gmra.mxu0 %v222
    %v373 = vpop.f32.mrf.mxu0
    %v374 = vadd.f32 %v345, %v373
    %v375 = vpop.f32.mrf.mxu0
    %v376 = vadd.f32 %v347, %v375
    %377 = vdwg.mxu0
    %vm378 = vcmp.gt.f32.partialorder %v359, 0.0
    %vm379 = vcmp.gt.f32.partialorder %v361, 0.0
    %vm380 = vcmp.gt.f32.partialorder %v364, 0.0
    %vm381 = vcmp.gt.f32.partialorder %v366, 0.0
    %vm382 = vcmp.gt.f32.partialorder %v369, 0.0
    %vm383 = vcmp.gt.f32.partialorder %v371, 0.0
    %vm384 = vcmp.gt.f32.partialorder %v374, 0.0
    %vm385 = vcmp.gt.f32.partialorder %v376, 0.0
    %v386 = vmul.f32 %v359, 0.01
    %v387 = vmul.f32 %v361, 0.01
    %v388 = vmul.f32 %v364, 0.01
    %v389 = vmul.f32 %v366, 0.01
    %v390 = vmul.f32 %v369, 0.01
    %v391 = vmul.f32 %v371, 0.01
    %v392 = vmul.f32 %v374, 0.01
    %v393 = vmul.f32 %v376, 0.01
    %v394 = vsel %vm378, %v359, %v386
    %v395 = vsel %vm379, %v361, %v387
    %v396 = vsel %vm380, %v364, %v388
    %v397 = vsel %vm381, %v366, %v389
    %v398 = vsel %vm382, %v369, %v390
    %v399 = vsel %vm383, %v371, %v391
    %v400 = vsel %vm384, %v374, %v392
    %v401 = vsel %vm385, %v376, %v393
    %v402 = vpack.c.bf16 %v395, %v394
    %v403 = vpack.c.bf16 %v397, %v396
    %v404 = vpack.c.bf16 %v399, %v398
    %v405 = vpack.c.bf16 %v401, %v400
    %v406 = vperm.slane %v179, 0
    %v423 = vunpack.c.l.b16 %v82
    %v424 = vunpack.c.l.b16 %v83
    %v425 = vunpack.c.l.b16 %v84
    %v426 = vunpack.c.l.b16 %v85
    %v427 = vunpack.c.l.b16 %v86
    %v428 = vunpack.c.l.b16 %v87
    %v429 = vunpack.c.l.b16 %v88
    %v430 = vunpack.c.l.b16 %v89
    %v431 = vunpack.c.l.b16 %v90
    %v432 = vunpack.c.l.b16 %v91
    %v433 = vunpack.c.l.b16 %v92
    %v434 = vunpack.c.l.b16 %v93
    %v435 = vunpack.c.l.b16 %v94
    %v436 = vunpack.c.l.b16 %v95
    %v437 = vunpack.c.l.b16 %v96
    %v438 = vunpack.c.l.b16 %v97
    %v439 = vpack.c.b16 %v424, %v423
    %v440 = vpack.c.b16 %v426, %v425
    %v441 = vpack.c.b16 %v428, %v427
    %v442 = vpack.c.b16 %v430, %v429
    %v443 = vpack.c.b16 %v432, %v431
    %v444 = vpack.c.b16 %v434, %v433
    %v445 = vpack.c.b16 %v436, %v435
    %v446 = vpack.c.b16 %v438, %v437
    %455 = vmatpush.bf16.msra.mxu0 %v446
    %456 = vmatpush.bf16.msra.mxu0 %v445
    %457 = vmatpush.bf16.msra.mxu0 %v444
    %458 = vmatpush.bf16.msra.mxu0 %v443
    %459 = vmatpush.bf16.msra.mxu0 %v442
    %460 = vmatpush.bf16.msra.mxu0 %v441
    %461 = vmatpush.bf16.msra.mxu0 %v440
    %462 = vmatpush.bf16.msra.mxu0 %v439
    %463 = vmatmul.bf16.gmra.mxu0 %v402
    %v464 = vpop.f32.mrf.mxu0
    %v465 = vadd.f32 %v406, %v464
    %v466 = vpop.f32.mrf.mxu0
    %v467 = vadd.f32 %v406, %v466
    %468 = vmatmul.bf16.gmra.mxu0 %v403
    %v469 = vpop.f32.mrf.mxu0
    %v470 = vadd.f32 %v406, %v469
    %v471 = vpop.f32.mrf.mxu0
    %v472 = vadd.f32 %v406, %v471
    %473 = vmatmul.bf16.gmra.mxu0 %v404
    %v474 = vpop.f32.mrf.mxu0
    %v475 = vadd.f32 %v406, %v474
    %v476 = vpop.f32.mrf.mxu0
    %v477 = vadd.f32 %v406, %v476
    %478 = vmatmul.bf16.gmra.mxu0 %v405
    %v479 = vpop.f32.mrf.mxu0
    %v480 = vadd.f32 %v406, %v479
    %v481 = vpop.f32.mrf.mxu0
    %v482 = vadd.f32 %v406, %v481
    %483 = vdwg.mxu0
    %vm484 = vcmp.gt.f32.partialorder %v465, 0.0
    %vm485 = vcmp.gt.f32.partialorder %v467, 0.0
    %vm486 = vcmp.gt.f32.partialorder %v470, 0.0
    %vm487 = vcmp.gt.f32.partialorder %v472, 0.0
    %vm488 = vcmp.gt.f32.partialorder %v475, 0.0
    %vm489 = vcmp.gt.f32.partialorder %v477, 0.0
    %vm490 = vcmp.gt.f32.partialorder %v480, 0.0
    %vm491 = vcmp.gt.f32.partialorder %v482, 0.0
    %v492 = vmul.f32 %v465, 0.01
    %v493 = vmul.f32 %v467, 0.01
    %v494 = vmul.f32 %v470, 0.01
    %v495 = vmul.f32 %v472, 0.01
    %v496 = vmul.f32 %v475, 0.01
    %v497 = vmul.f32 %v477, 0.01
    %v498 = vmul.f32 %v480, 0.01
    %v499 = vmul.f32 %v482, 0.01
    %v500 = vsel %vm484, %v465, %v492
    %v501 = vsel %vm485, %v467, %v493
    %v502 = vsel %vm486, %v470, %v494
    %v503 = vsel %vm487, %v472, %v495
    %v504 = vsel %vm488, %v475, %v496
    %v505 = vsel %vm489, %v477, %v497
    %v506 = vsel %vm490, %v480, %v498
    %v507 = vsel %vm491, %v482, %v499
    %v508 = vperm.slane %v180, 0
    %v509 = vpack.c.bf16 %v500, %v500
    %v510 = vpack.c.bf16 %v501, %v501
    %v511 = vpack.c.bf16 %v502, %v502
    %v512 = vpack.c.bf16 %v503, %v503
    %v513 = vpack.c.bf16 %v504, %v504
    %v514 = vpack.c.bf16 %v505, %v505
    %v515 = vpack.c.bf16 %v506, %v506
    %v516 = vpack.c.bf16 %v507, %v507
    %v533 = vunpack.c.l.b16 %v183
    %v534 = vunpack.c.l.b16 %v184
    %v535 = vunpack.c.l.b16 %v185
    %v536 = vunpack.c.l.b16 %v186
    %v537 = vunpack.c.l.b16 %v187
    %v538 = vunpack.c.l.b16 %v188
    %v539 = vunpack.c.l.b16 %v189
    %v540 = vunpack.c.l.b16 %v190
    %v541 = vunpack.c.l.b16 %v191
    %v542 = vunpack.c.l.b16 %v192
    %v543 = vunpack.c.l.b16 %v193
    %v544 = vunpack.c.l.b16 %v194
    %v545 = vunpack.c.l.b16 %v195
    %v546 = vunpack.c.l.b16 %v196
    %v547 = vunpack.c.l.b16 %v197
    %v548 = vunpack.c.l.b16 %v198
    %v549 = vpack.c.b16 %v534, %v533
    %v550 = vpack.c.b16 %v536, %v535
    %v551 = vpack.c.b16 %v538, %v537
    %v552 = vpack.c.b16 %v540, %v539
    %v553 = vpack.c.b16 %v542, %v541
    %v554 = vpack.c.b16 %v544, %v543
    %v555 = vpack.c.b16 %v546, %v545
    %v556 = vpack.c.b16 %v548, %v547
    %v565 = vunpack.c.l.b16 %v509
    %v566 = vunpack.c.l.b16 %v510
    %v567 = vunpack.c.l.b16 %v511
    %v568 = vunpack.c.l.b16 %v512
    %v569 = vunpack.c.l.b16 %v513
    %v570 = vunpack.c.l.b16 %v514
    %v571 = vunpack.c.l.b16 %v515
    %v572 = vunpack.c.l.b16 %v516
    %v573 = vpack.c.b16 %v566, %v565
    %v574 = vpack.c.b16 %v568, %v567
    %v575 = vpack.c.b16 %v570, %v569
    %v576 = vpack.c.b16 %v572, %v571
    %vm581 = vcmask 523264
    %v583 = vsel %vm581, %v549, 0
    %v586 = vsel %vm581, %v550, 0
    %v589 = vsel %vm581, %v551, 0
    %v592 = vsel %vm581, %v552, 0
    %v595 = vsel %vm581, %v553, 0
    %v598 = vsel %vm581, %v554, 0
    %v601 = vsel %vm581, %v555, 0
    %v604 = vsel %vm581, %v556, 0
    %606 = vmatpush.bf16.msra.mxu0 0
    %607 = vmatpush.bf16.msra.mxu0 0
    %608 = vmatpush.bf16.msra.mxu0 0
    %609 = vmatpush.bf16.msra.mxu0 0
    %610 = vmatpush.bf16.msra.mxu0 %v576
    %611 = vmatpush.bf16.msra.mxu0 %v575
    %612 = vmatpush.bf16.msra.mxu0 %v574
    %613 = vmatpush.bf16.msra.mxu0 %v573
    %614 = vmatmul.bf16.gmra.mxu0 %v583
    %v615 = vpop.f32.mrf.mxu0
    %v616 = vadd.f32 0.0, %v615
    %v617 = vpop.f32.mrf.mxu0
    %v618 = vadd.f32 0.0, %v617
    %619 = vmatmul.bf16.gmra.mxu0 %v586
    %v620 = vpop.f32.mrf.mxu0
    %v621 = vadd.f32 0.0, %v620
    %v622 = vpop.f32.mrf.mxu0
    %v623 = vadd.f32 0.0, %v622
    %624 = vmatmul.bf16.gmra.mxu0 %v589
    %v625 = vpop.f32.mrf.mxu0
    %v626 = vadd.f32 0.0, %v625
    %v627 = vpop.f32.mrf.mxu0
    %v628 = vadd.f32 0.0, %v627
    %629 = vmatmul.bf16.gmra.mxu0 %v592
    %v630 = vpop.f32.mrf.mxu0
    %v631 = vadd.f32 0.0, %v630
    %v632 = vpop.f32.mrf.mxu0
    %v633 = vadd.f32 0.0, %v632
    %634 = vmatmul.bf16.gmra.mxu0 %v595
    %v635 = vpop.f32.mrf.mxu0
    %v636 = vadd.f32 0.0, %v635
    %v637 = vpop.f32.mrf.mxu0
    %v638 = vadd.f32 0.0, %v637
    %639 = vmatmul.bf16.gmra.mxu0 %v598
    %v640 = vpop.f32.mrf.mxu0
    %v641 = vadd.f32 0.0, %v640
    %v642 = vpop.f32.mrf.mxu0
    %v643 = vadd.f32 0.0, %v642
    %644 = vmatmul.bf16.gmra.mxu0 %v601
    %v645 = vpop.f32.mrf.mxu0
    %v646 = vadd.f32 0.0, %v645
    %v647 = vpop.f32.mrf.mxu0
    %v648 = vadd.f32 0.0, %v647
    %649 = vmatmul.bf16.gmra.mxu0 %v604
    %v650 = vpop.f32.mrf.mxu0
    %v651 = vadd.f32 0.0, %v650
    %v652 = vpop.f32.mrf.mxu0
    %v653 = vadd.f32 0.0, %v652
    %654 = vdwg.mxu0
    %v655 = vpack.c.bf16 %v616, %v616
    %v656 = vpack.c.bf16 %v618, %v618
    %v657 = vpack.c.bf16 %v621, %v621
    %v658 = vpack.c.bf16 %v623, %v623
    %v659 = vpack.c.bf16 %v626, %v626
    %v660 = vpack.c.bf16 %v628, %v628
    %v661 = vpack.c.bf16 %v631, %v631
    %v662 = vpack.c.bf16 %v633, %v633
    %v663 = vpack.c.bf16 %v636, %v636
    %v664 = vpack.c.bf16 %v638, %v638
    %v665 = vpack.c.bf16 %v641, %v641
    %v666 = vpack.c.bf16 %v643, %v643
    %v667 = vpack.c.bf16 %v646, %v646
    %v668 = vpack.c.bf16 %v648, %v648
    %v669 = vpack.c.bf16 %v651, %v651
    %v670 = vpack.c.bf16 %v653, %v653
    %v679 = vunpack.c.l.b16 %v655
    %v680 = vunpack.c.l.b16 %v656
    %v681 = vunpack.c.l.b16 %v657
    %v682 = vunpack.c.l.b16 %v658
    %v683 = vunpack.c.l.b16 %v659
    %v684 = vunpack.c.l.b16 %v660
    %v685 = vunpack.c.l.b16 %v661
    %v686 = vunpack.c.l.b16 %v662
    %v687 = vpack.c.b16 %v680, %v679
    %v688 = vpack.c.b16 %v682, %v681
    %v689 = vpack.c.b16 %v684, %v683
    %v690 = vpack.c.b16 %v686, %v685
    %v703 = vunpack.c.l.b16 %v663
    %v704 = vunpack.c.l.b16 %v664
    %v705 = vunpack.c.l.b16 %v665
    %v706 = vunpack.c.l.b16 %v666
    %v707 = vunpack.c.l.b16 %v667
    %v708 = vunpack.c.l.b16 %v668
    %v709 = vunpack.c.l.b16 %v669
    %v710 = vunpack.c.l.b16 %v670
    %v711 = vpack.c.b16 %v704, %v703
    %v712 = vpack.c.b16 %v706, %v705
    %v713 = vpack.c.b16 %v708, %v707
    %v714 = vpack.c.b16 %v710, %v709
    %v767 = vunpack.c.l.b16 %v98
    %v768 = vunpack.c.l.b16 %v99
    %v769 = vunpack.c.l.b16 %v100
    %v770 = vunpack.c.l.b16 %v101
    %v771 = vunpack.c.l.b16 %v102
    %v772 = vunpack.c.l.b16 %v103
    %v773 = vunpack.c.l.b16 %v104
    %v774 = vunpack.c.l.b16 %v105
    %v775 = vunpack.c.l.b16 %v106
    %v776 = vunpack.c.l.b16 %v107
    %v777 = vunpack.c.l.b16 %v108
    %v778 = vunpack.c.l.b16 %v109
    %v779 = vunpack.c.l.b16 %v110
    %v780 = vunpack.c.l.b16 %v111
    %v781 = vunpack.c.l.b16 %v112
    %v782 = vunpack.c.l.b16 %v113
    %v783 = vunpack.c.l.b16 %v114
    %v784 = vunpack.c.l.b16 %v115
    %v785 = vunpack.c.l.b16 %v116
    %v786 = vunpack.c.l.b16 %v117
    %v787 = vunpack.c.l.b16 %v118
    %v788 = vunpack.c.l.b16 %v119
    %v789 = vunpack.c.l.b16 %v120
    %v790 = vunpack.c.l.b16 %v121
    %v791 = vunpack.c.l.b16 %v122
    %v792 = vunpack.c.l.b16 %v123
    %v793 = vunpack.c.l.b16 %v124
    %v794 = vunpack.c.l.b16 %v125
    %v795 = vunpack.c.l.b16 %v126
    %v796 = vunpack.c.l.b16 %v127
    %v797 = vunpack.c.l.b16 %v128
    %v798 = vunpack.c.l.b16 %v129
    %v799 = vunpack.c.l.b16 %v130
    %v800 = vunpack.c.l.b16 %v131
    %v801 = vunpack.c.l.b16 %v132
    %v802 = vunpack.c.l.b16 %v133
    %v803 = vunpack.c.l.b16 %v134
    %v804 = vunpack.c.l.b16 %v135
    %v805 = vunpack.c.l.b16 %v136
    %v806 = vunpack.c.l.b16 %v137
    %v807 = vunpack.c.l.b16 %v138
    %v808 = vunpack.c.l.b16 %v139
    %v809 = vunpack.c.l.b16 %v140
    %v810 = vunpack.c.l.b16 %v141
    %v811 = vunpack.c.l.b16 %v142
    %v812 = vunpack.c.l.b16 %v143
    %v813 = vunpack.c.l.b16 %v144
    %v814 = vunpack.c.l.b16 %v145
    %v815 = vpack.c.b16 %v768, %v767
    %v816 = vpack.c.b16 %v770, %v769
    %v817 = vpack.c.b16 %v772, %v771
    %v818 = vpack.c.b16 %v774, %v773
    %v819 = vpack.c.b16 %v776, %v775
    %v820 = vpack.c.b16 %v778, %v777
    %v821 = vpack.c.b16 %v780, %v779
    %v822 = vpack.c.b16 %v782, %v781
    %v823 = vpack.c.b16 %v784, %v783
    %v824 = vpack.c.b16 %v786, %v785
    %v825 = vpack.c.b16 %v788, %v787
    %v826 = vpack.c.b16 %v790, %v789
    %v827 = vpack.c.b16 %v792, %v791
    %v828 = vpack.c.b16 %v794, %v793
    %v829 = vpack.c.b16 %v796, %v795
    %v830 = vpack.c.b16 %v798, %v797
    %v831 = vpack.c.b16 %v800, %v799
    %v832 = vpack.c.b16 %v802, %v801
    %v833 = vpack.c.b16 %v804, %v803
    %v834 = vpack.c.b16 %v806, %v805
    %v835 = vpack.c.b16 %v808, %v807
    %v836 = vpack.c.b16 %v810, %v809
    %v837 = vpack.c.b16 %v812, %v811
    %v838 = vpack.c.b16 %v814, %v813
    %863 = vmatpush.bf16.msra.mxu0 %v822
    %864 = vmatpush.bf16.msra.mxu0 %v821
    %865 = vmatpush.bf16.msra.mxu0 %v820
    %866 = vmatpush.bf16.msra.mxu0 %v819
    %867 = vmatpush.bf16.msra.mxu0 %v818
    %868 = vmatpush.bf16.msra.mxu0 %v817
    %869 = vmatpush.bf16.msra.mxu0 %v816
    %870 = vmatpush.bf16.msra.mxu0 %v815
    %871 = vmatmul.bf16.gmra.mxu0 %v573
    %v872 = vpop.f32.mrf.mxu0
    %v873 = vadd.f32 %v508, %v872
    %v874 = vpop.f32.mrf.mxu0
    %v875 = vadd.f32 %v508, %v874
    %876 = vmatmul.bf16.gmra.mxu0 %v574
    %v877 = vpop.f32.mrf.mxu0
    %v878 = vadd.f32 %v508, %v877
    %v879 = vpop.f32.mrf.mxu0
    %v880 = vadd.f32 %v508, %v879
    %881 = vmatmul.bf16.gmra.mxu0 %v575
    %v882 = vpop.f32.mrf.mxu0
    %v883 = vadd.f32 %v508, %v882
    %v884 = vpop.f32.mrf.mxu0
    %v885 = vadd.f32 %v508, %v884
    %886 = vmatmul.bf16.gmra.mxu0 %v576
    %v887 = vpop.f32.mrf.mxu0
    %v888 = vadd.f32 %v508, %v887
    %v889 = vpop.f32.mrf.mxu0
    %v890 = vadd.f32 %v508, %v889
    %891 = vdwg.mxu0
    %892 = vmatpush.bf16.msra.mxu0 %v830
    %893 = vmatpush.bf16.msra.mxu0 %v829
    %894 = vmatpush.bf16.msra.mxu0 %v828
    %895 = vmatpush.bf16.msra.mxu0 %v827
    %896 = vmatpush.bf16.msra.mxu0 %v826
    %897 = vmatpush.bf16.msra.mxu0 %v825
    %898 = vmatpush.bf16.msra.mxu0 %v824
    %899 = vmatpush.bf16.msra.mxu0 %v823
    %900 = vmatmul.bf16.gmra.mxu0 %v687
    %v901 = vpop.f32.mrf.mxu0
    %v902 = vadd.f32 %v873, %v901
    %v903 = vpop.f32.mrf.mxu0
    %v904 = vadd.f32 %v875, %v903
    %905 = vmatmul.bf16.gmra.mxu0 %v688
    %v906 = vpop.f32.mrf.mxu0
    %v907 = vadd.f32 %v878, %v906
    %v908 = vpop.f32.mrf.mxu0
    %v909 = vadd.f32 %v880, %v908
    %910 = vmatmul.bf16.gmra.mxu0 %v689
    %v911 = vpop.f32.mrf.mxu0
    %v912 = vadd.f32 %v883, %v911
    %v913 = vpop.f32.mrf.mxu0
    %v914 = vadd.f32 %v885, %v913
    %915 = vmatmul.bf16.gmra.mxu0 %v690
    %v916 = vpop.f32.mrf.mxu0
    %v917 = vadd.f32 %v888, %v916
    %v918 = vpop.f32.mrf.mxu0
    %v919 = vadd.f32 %v890, %v918
    %920 = vdwg.mxu0
    %921 = vmatpush.bf16.msra.mxu0 %v838
    %922 = vmatpush.bf16.msra.mxu0 %v837
    %923 = vmatpush.bf16.msra.mxu0 %v836
    %924 = vmatpush.bf16.msra.mxu0 %v835
    %925 = vmatpush.bf16.msra.mxu0 %v834
    %926 = vmatpush.bf16.msra.mxu0 %v833
    %927 = vmatpush.bf16.msra.mxu0 %v832
    %928 = vmatpush.bf16.msra.mxu0 %v831
    %929 = vmatmul.bf16.gmra.mxu0 %v711
    %v930 = vpop.f32.mrf.mxu0
    %v931 = vadd.f32 %v902, %v930
    %v932 = vpop.f32.mrf.mxu0
    %v933 = vadd.f32 %v904, %v932
    %934 = vmatmul.bf16.gmra.mxu0 %v712
    %v935 = vpop.f32.mrf.mxu0
    %v936 = vadd.f32 %v907, %v935
    %v937 = vpop.f32.mrf.mxu0
    %v938 = vadd.f32 %v909, %v937
    %939 = vmatmul.bf16.gmra.mxu0 %v713
    %v940 = vpop.f32.mrf.mxu0
    %v941 = vadd.f32 %v912, %v940
    %v942 = vpop.f32.mrf.mxu0
    %v943 = vadd.f32 %v914, %v942
    %944 = vmatmul.bf16.gmra.mxu0 %v714
    %v945 = vpop.f32.mrf.mxu0
    %v946 = vadd.f32 %v917, %v945
    %v947 = vpop.f32.mrf.mxu0
    %v948 = vadd.f32 %v919, %v947
    %949 = vdwg.mxu0
    %v950 = vpack.c.bf16 %v931, %v931
    %v951 = vpack.c.bf16 %v933, %v933
    %v952 = vpack.c.bf16 %v936, %v936
    %v953 = vpack.c.bf16 %v938, %v938
    %v954 = vpack.c.bf16 %v941, %v941
    %v955 = vpack.c.bf16 %v943, %v943
    %v956 = vpack.c.bf16 %v946, %v946
    %v957 = vpack.c.bf16 %v948, %v948
    %v966 = vunpack.c.l.b16 %v950
    %v967 = vunpack.c.l.b16 %v951
    %v968 = vunpack.c.l.b16 %v952
    %v969 = vunpack.c.l.b16 %v953
    %v970 = vunpack.c.l.b16 %v954
    %v971 = vunpack.c.l.b16 %v955
    %v972 = vunpack.c.l.b16 %v956
    %v973 = vunpack.c.l.b16 %v957
    %v974 = vpack.c.b16 %v967, %v966
    %v975 = vpack.c.b16 %v969, %v968
    %v976 = vpack.c.b16 %v971, %v970
    %v977 = vpack.c.b16 %v973, %v972
    %982 = vmatpush.bf16.msra.mxu0 0
    %983 = vmatpush.bf16.msra.mxu0 0
    %984 = vmatpush.bf16.msra.mxu0 0
    %985 = vmatpush.bf16.msra.mxu0 0
    %986 = vmatpush.bf16.msra.mxu0 %v977
    %987 = vmatpush.bf16.msra.mxu0 %v976
    %988 = vmatpush.bf16.msra.mxu0 %v975
    %989 = vmatpush.bf16.msra.mxu0 %v974
    %990 = vmatmul.bf16.gmra.mxu0 %v583
    %v991 = vpop.f32.mrf.mxu0
    %v992 = vadd.f32 0.0, %v991
    %v993 = vpop.f32.mrf.mxu0
    %v994 = vadd.f32 0.0, %v993
    %995 = vmatmul.bf16.gmra.mxu0 %v586
    %v996 = vpop.f32.mrf.mxu0
    %v997 = vadd.f32 0.0, %v996
    %v998 = vpop.f32.mrf.mxu0
    %v999 = vadd.f32 0.0, %v998
    %1000 = vmatmul.bf16.gmra.mxu0 %v589
    %v1001 = vpop.f32.mrf.mxu0
    %v1002 = vadd.f32 0.0, %v1001
    %v1003 = vpop.f32.mrf.mxu0
    %v1004 = vadd.f32 0.0, %v1003
    %1005 = vmatmul.bf16.gmra.mxu0 %v592
    %v1006 = vpop.f32.mrf.mxu0
    %v1007 = vadd.f32 0.0, %v1006
    %v1008 = vpop.f32.mrf.mxu0
    %v1009 = vadd.f32 0.0, %v1008
    %1010 = vmatmul.bf16.gmra.mxu0 %v595
    %v1011 = vpop.f32.mrf.mxu0
    %v1012 = vadd.f32 0.0, %v1011
    %v1013 = vpop.f32.mrf.mxu0
    %v1014 = vadd.f32 0.0, %v1013
    %1015 = vmatmul.bf16.gmra.mxu0 %v598
    %v1016 = vpop.f32.mrf.mxu0
    %v1017 = vadd.f32 0.0, %v1016
    %v1018 = vpop.f32.mrf.mxu0
    %v1019 = vadd.f32 0.0, %v1018
    %1020 = vmatmul.bf16.gmra.mxu0 %v601
    %v1021 = vpop.f32.mrf.mxu0
    %v1022 = vadd.f32 0.0, %v1021
    %v1023 = vpop.f32.mrf.mxu0
    %v1024 = vadd.f32 0.0, %v1023
    %1025 = vmatmul.bf16.gmra.mxu0 %v604
    %v1026 = vpop.f32.mrf.mxu0
    %v1027 = vadd.f32 0.0, %v1026
    %v1028 = vpop.f32.mrf.mxu0
    %v1029 = vadd.f32 0.0, %v1028
    %1030 = vdwg.mxu0
    %v1031 = vpack.c.bf16 %v992, %v992
    %v1032 = vpack.c.bf16 %v994, %v994
    %v1033 = vpack.c.bf16 %v997, %v997
    %v1034 = vpack.c.bf16 %v999, %v999
    %v1035 = vpack.c.bf16 %v1002, %v1002
    %v1036 = vpack.c.bf16 %v1004, %v1004
    %v1037 = vpack.c.bf16 %v1007, %v1007
    %v1038 = vpack.c.bf16 %v1009, %v1009
    %v1039 = vpack.c.bf16 %v1012, %v1012
    %v1040 = vpack.c.bf16 %v1014, %v1014
    %v1041 = vpack.c.bf16 %v1017, %v1017
    %v1042 = vpack.c.bf16 %v1019, %v1019
    %v1043 = vpack.c.bf16 %v1022, %v1022
    %v1044 = vpack.c.bf16 %v1024, %v1024
    %v1045 = vpack.c.bf16 %v1027, %v1027
    %v1046 = vpack.c.bf16 %v1029, %v1029
    %v1055 = vunpack.c.l.b16 %v1031
    %v1056 = vunpack.c.l.b16 %v1032
    %v1057 = vunpack.c.l.b16 %v1033
    %v1058 = vunpack.c.l.b16 %v1034
    %v1059 = vunpack.c.l.b16 %v1035
    %v1060 = vunpack.c.l.b16 %v1036
    %v1061 = vunpack.c.l.b16 %v1037
    %v1062 = vunpack.c.l.b16 %v1038
    %v1063 = vpack.c.b16 %v1056, %v1055
    %v1064 = vpack.c.b16 %v1058, %v1057
    %v1065 = vpack.c.b16 %v1060, %v1059
    %v1066 = vpack.c.b16 %v1062, %v1061
    %v1079 = vunpack.c.l.b16 %v1039
    %v1080 = vunpack.c.l.b16 %v1040
    %v1081 = vunpack.c.l.b16 %v1041
    %v1082 = vunpack.c.l.b16 %v1042
    %v1083 = vunpack.c.l.b16 %v1043
    %v1084 = vunpack.c.l.b16 %v1044
    %v1085 = vunpack.c.l.b16 %v1045
    %v1086 = vunpack.c.l.b16 %v1046
    %v1087 = vpack.c.b16 %v1080, %v1079
    %v1088 = vpack.c.b16 %v1082, %v1081
    %v1089 = vpack.c.b16 %v1084, %v1083
    %v1090 = vpack.c.b16 %v1086, %v1085
    %1095 = vmatpush.bf16.msra.mxu0 %v822
    %1096 = vmatpush.bf16.msra.mxu0 %v821
    %1097 = vmatpush.bf16.msra.mxu0 %v820
    %1098 = vmatpush.bf16.msra.mxu0 %v819
    %1099 = vmatpush.bf16.msra.mxu0 %v818
    %1100 = vmatpush.bf16.msra.mxu0 %v817
    %1101 = vmatpush.bf16.msra.mxu0 %v816
    %1102 = vmatpush.bf16.msra.mxu0 %v815
    %1103 = vmatmul.bf16.gmra.mxu0 %v974
    %v1104 = vpop.f32.mrf.mxu0
    %v1105 = vadd.f32 %v508, %v1104
    %v1106 = vpop.f32.mrf.mxu0
    %v1107 = vadd.f32 %v508, %v1106
    %1108 = vmatmul.bf16.gmra.mxu0 %v975
    %v1109 = vpop.f32.mrf.mxu0
    %v1110 = vadd.f32 %v508, %v1109
    %v1111 = vpop.f32.mrf.mxu0
    %v1112 = vadd.f32 %v508, %v1111
    %1113 = vmatmul.bf16.gmra.mxu0 %v976
    %v1114 = vpop.f32.mrf.mxu0
    %v1115 = vadd.f32 %v508, %v1114
    %v1116 = vpop.f32.mrf.mxu0
    %v1117 = vadd.f32 %v508, %v1116
    %1118 = vmatmul.bf16.gmra.mxu0 %v977
    %v1119 = vpop.f32.mrf.mxu0
    %v1120 = vadd.f32 %v508, %v1119
    %v1121 = vpop.f32.mrf.mxu0
    %v1122 = vadd.f32 %v508, %v1121
    %1123 = vdwg.mxu0
    %1124 = vmatpush.bf16.msra.mxu0 %v830
    %1125 = vmatpush.bf16.msra.mxu0 %v829
    %1126 = vmatpush.bf16.msra.mxu0 %v828
    %1127 = vmatpush.bf16.msra.mxu0 %v827
    %1128 = vmatpush.bf16.msra.mxu0 %v826
    %1129 = vmatpush.bf16.msra.mxu0 %v825
    %1130 = vmatpush.bf16.msra.mxu0 %v824
    %1131 = vmatpush.bf16.msra.mxu0 %v823
    %1132 = vmatmul.bf16.gmra.mxu0 %v1063
    %v1133 = vpop.f32.mrf.mxu0
    %v1134 = vadd.f32 %v1105, %v1133
    %v1135 = vpop.f32.mrf.mxu0
    %v1136 = vadd.f32 %v1107, %v1135
    %1137 = vmatmul.bf16.gmra.mxu0 %v1064
    %v1138 = vpop.f32.mrf.mxu0
    %v1139 = vadd.f32 %v1110, %v1138
    %v1140 = vpop.f32.mrf.mxu0
    %v1141 = vadd.f32 %v1112, %v1140
    %1142 = vmatmul.bf16.gmra.mxu0 %v1065
    %v1143 = vpop.f32.mrf.mxu0
    %v1144 = vadd.f32 %v1115, %v1143
    %v1145 = vpop.f32.mrf.mxu0
    %v1146 = vadd.f32 %v1117, %v1145
    %1147 = vmatmul.bf16.gmra.mxu0 %v1066
    %v1148 = vpop.f32.mrf.mxu0
    %v1149 = vadd.f32 %v1120, %v1148
    %v1150 = vpop.f32.mrf.mxu0
    %v1151 = vadd.f32 %v1122, %v1150
    %1152 = vdwg.mxu0
    %1153 = vmatpush.bf16.msra.mxu0 %v838
    %1154 = vmatpush.bf16.msra.mxu0 %v837
    %1155 = vmatpush.bf16.msra.mxu0 %v836
    %1156 = vmatpush.bf16.msra.mxu0 %v835
    %1157 = vmatpush.bf16.msra.mxu0 %v834
    %1158 = vmatpush.bf16.msra.mxu0 %v833
    %1159 = vmatpush.bf16.msra.mxu0 %v832
    %1160 = vmatpush.bf16.msra.mxu0 %v831
    %1161 = vmatmul.bf16.gmra.mxu0 %v1087
    %v1162 = vpop.f32.mrf.mxu0
    %v1163 = vadd.f32 %v1134, %v1162
    %v1164 = vpop.f32.mrf.mxu0
    %v1165 = vadd.f32 %v1136, %v1164
    %1166 = vmatmul.bf16.gmra.mxu0 %v1088
    %v1167 = vpop.f32.mrf.mxu0
    %v1168 = vadd.f32 %v1139, %v1167
    %v1169 = vpop.f32.mrf.mxu0
    %v1170 = vadd.f32 %v1141, %v1169
    %1171 = vmatmul.bf16.gmra.mxu0 %v1089
    %v1172 = vpop.f32.mrf.mxu0
    %v1173 = vadd.f32 %v1144, %v1172
    %v1174 = vpop.f32.mrf.mxu0
    %v1175 = vadd.f32 %v1146, %v1174
    %1176 = vmatmul.bf16.gmra.mxu0 %v1090
    %v1177 = vpop.f32.mrf.mxu0
    %v1178 = vadd.f32 %v1149, %v1177
    %v1179 = vpop.f32.mrf.mxu0
    %v1180 = vadd.f32 %v1151, %v1179
    %1181 = vdwg.mxu0
    %v1182 = vpack.c.bf16 %v1165, %v1163
    %v1183 = vpack.c.bf16 %v1170, %v1168
    %v1184 = vpack.c.bf16 %v1175, %v1173
    %v1185 = vpack.c.bf16 %v1180, %v1178
    %v1186 = vperm.slane %v181, 0
    %v1203 = vunpack.c.l.b16 %v146
    %v1204 = vunpack.c.l.b16 %v147
    %v1205 = vunpack.c.l.b16 %v148
    %v1206 = vunpack.c.l.b16 %v149
    %v1207 = vunpack.c.l.b16 %v150
    %v1208 = vunpack.c.l.b16 %v151
    %v1209 = vunpack.c.l.b16 %v152
    %v1210 = vunpack.c.l.b16 %v153
    %v1211 = vunpack.c.l.b16 %v154
    %v1212 = vunpack.c.l.b16 %v155
    %v1213 = vunpack.c.l.b16 %v156
    %v1214 = vunpack.c.l.b16 %v157
    %v1215 = vunpack.c.l.b16 %v158
    %v1216 = vunpack.c.l.b16 %v159
    %v1217 = vunpack.c.l.b16 %v160
    %v1218 = vunpack.c.l.b16 %v161
    %v1219 = vpack.c.b16 %v1204, %v1203
    %v1220 = vpack.c.b16 %v1206, %v1205
    %v1221 = vpack.c.b16 %v1208, %v1207
    %v1222 = vpack.c.b16 %v1210, %v1209
    %v1223 = vpack.c.b16 %v1212, %v1211
    %v1224 = vpack.c.b16 %v1214, %v1213
    %v1225 = vpack.c.b16 %v1216, %v1215
    %v1226 = vpack.c.b16 %v1218, %v1217
    %1235 = vmatpush.bf16.msra.mxu0 %v1226
    %1236 = vmatpush.bf16.msra.mxu0 %v1225
    %1237 = vmatpush.bf16.msra.mxu0 %v1224
    %1238 = vmatpush.bf16.msra.mxu0 %v1223
    %1239 = vmatpush.bf16.msra.mxu0 %v1222
    %1240 = vmatpush.bf16.msra.mxu0 %v1221
    %1241 = vmatpush.bf16.msra.mxu0 %v1220
    %1242 = vmatpush.bf16.msra.mxu0 %v1219
    %1243 = vmatmul.bf16.gmra.mxu0 %v1182
    %v1244 = vpop.f32.mrf.mxu0
    %v1245 = vadd.f32 %v1186, %v1244
    %v1246 = vpop.f32.mrf.mxu0
    %v1247 = vadd.f32 %v1186, %v1246
    %1248 = vmatmul.bf16.gmra.mxu0 %v1183
    %v1249 = vpop.f32.mrf.mxu0
    %v1250 = vadd.f32 %v1186, %v1249
    %v1251 = vpop.f32.mrf.mxu0
    %v1252 = vadd.f32 %v1186, %v1251
    %1253 = vmatmul.bf16.gmra.mxu0 %v1184
    %v1254 = vpop.f32.mrf.mxu0
    %v1255 = vadd.f32 %v1186, %v1254
    %v1256 = vpop.f32.mrf.mxu0
    %v1257 = vadd.f32 %v1186, %v1256
    %1258 = vmatmul.bf16.gmra.mxu0 %v1185
    %v1259 = vpop.f32.mrf.mxu0
    %v1260 = vadd.f32 %v1186, %v1259
    %v1261 = vpop.f32.mrf.mxu0
    %v1262 = vadd.f32 %v1186, %v1261
    %1263 = vdwg.mxu0
    %vm1264 = vcmp.gt.f32.partialorder %v1245, 0.0
    %vm1265 = vcmp.gt.f32.partialorder %v1247, 0.0
    %vm1266 = vcmp.gt.f32.partialorder %v1250, 0.0
    %vm1267 = vcmp.gt.f32.partialorder %v1252, 0.0
    %vm1268 = vcmp.gt.f32.partialorder %v1255, 0.0
    %vm1269 = vcmp.gt.f32.partialorder %v1257, 0.0
    %vm1270 = vcmp.gt.f32.partialorder %v1260, 0.0
    %vm1271 = vcmp.gt.f32.partialorder %v1262, 0.0
    %v1272 = vmul.f32 %v1245, 0.01
    %v1273 = vmul.f32 %v1247, 0.01
    %v1274 = vmul.f32 %v1250, 0.01
    %v1275 = vmul.f32 %v1252, 0.01
    %v1276 = vmul.f32 %v1255, 0.01
    %v1277 = vmul.f32 %v1257, 0.01
    %v1278 = vmul.f32 %v1260, 0.01
    %v1279 = vmul.f32 %v1262, 0.01
    %v1280 = vsel %vm1264, %v1245, %v1272
    %v1281 = vsel %vm1265, %v1247, %v1273
    %v1282 = vsel %vm1266, %v1250, %v1274
    %v1283 = vsel %vm1267, %v1252, %v1275
    %v1284 = vsel %vm1268, %v1255, %v1276
    %v1285 = vsel %vm1269, %v1257, %v1277
    %v1286 = vsel %vm1270, %v1260, %v1278
    %v1287 = vsel %vm1271, %v1262, %v1279
    %v1288 = vpack.c.bf16 %v1281, %v1280
    %v1289 = vpack.c.bf16 %v1283, %v1282
    %v1290 = vpack.c.bf16 %v1285, %v1284
    %v1291 = vpack.c.bf16 %v1287, %v1286
    %v1292 = vperm.slane %v182, 0
    %v1309 = vunpack.c.l.b16 %v162
    %v1310 = vunpack.c.l.b16 %v163
    %v1311 = vunpack.c.l.b16 %v164
    %v1312 = vunpack.c.l.b16 %v165
    %v1313 = vunpack.c.l.b16 %v166
    %v1314 = vunpack.c.l.b16 %v167
    %v1315 = vunpack.c.l.b16 %v168
    %v1316 = vunpack.c.l.b16 %v169
    %v1317 = vunpack.c.l.b16 %v170
    %v1318 = vunpack.c.l.b16 %v171
    %v1319 = vunpack.c.l.b16 %v172
    %v1320 = vunpack.c.l.b16 %v173
    %v1321 = vunpack.c.l.b16 %v174
    %v1322 = vunpack.c.l.b16 %v175
    %v1323 = vunpack.c.l.b16 %v176
    %v1324 = vunpack.c.l.b16 %v177
    %v1325 = vpack.c.b16 %v1310, %v1309
    %v1326 = vpack.c.b16 %v1312, %v1311
    %v1327 = vpack.c.b16 %v1314, %v1313
    %v1328 = vpack.c.b16 %v1316, %v1315
    %v1329 = vpack.c.b16 %v1318, %v1317
    %v1330 = vpack.c.b16 %v1320, %v1319
    %v1331 = vpack.c.b16 %v1322, %v1321
    %v1332 = vpack.c.b16 %v1324, %v1323
    %1341 = vmatpush.bf16.msra.mxu0 %v1332
    %1342 = vmatpush.bf16.msra.mxu0 %v1331
    %1343 = vmatpush.bf16.msra.mxu0 %v1330
    %1344 = vmatpush.bf16.msra.mxu0 %v1329
    %1345 = vmatpush.bf16.msra.mxu0 %v1328
    %1346 = vmatpush.bf16.msra.mxu0 %v1327
    %1347 = vmatpush.bf16.msra.mxu0 %v1326
    %1348 = vmatpush.bf16.msra.mxu0 %v1325
    %1349 = vmatmul.bf16.gmra.mxu0 %v1288
    %v1350 = vpop.f32.mrf.mxu0
    %v1351 = vadd.f32 %v1292, %v1350
    %v1352 = vpop.f32.mrf.mxu0
    %v1353 = vadd.f32 %v1292, %v1352
    %1354 = vmatmul.bf16.gmra.mxu0 %v1289
    %v1355 = vpop.f32.mrf.mxu0
    %v1356 = vadd.f32 %v1292, %v1355
    %v1357 = vpop.f32.mrf.mxu0
    %v1358 = vadd.f32 %v1292, %v1357
    %1359 = vmatmul.bf16.gmra.mxu0 %v1290
    %v1360 = vpop.f32.mrf.mxu0
    %v1361 = vadd.f32 %v1292, %v1360
    %v1362 = vpop.f32.mrf.mxu0
    %v1363 = vadd.f32 %v1292, %v1362
    %1364 = vmatmul.bf16.gmra.mxu0 %v1291
    %v1365 = vpop.f32.mrf.mxu0
    %v1366 = vadd.f32 %v1292, %v1365
    %v1367 = vpop.f32.mrf.mxu0
    %v1368 = vadd.f32 %v1292, %v1367
    %1369 = vdwg.mxu0
    %1370 = vst [vmem:[%s4] sm:$0xff] %v1351
    %1371 = vst [vmem:[%s4 + $0x8] sm:$0xff] %v1353
    %1372 = vst [vmem:[%s4 + $0x10] sm:$0xff] %v1356
    %1373 = vst [vmem:[%s4 + $0x18] sm:$0xff] %v1358
    %1374 = vst [vmem:[%s4 + $0x20] sm:$0xff] %v1361
    %1375 = vst [vmem:[%s4 + $0x28] sm:$0xff] %v1363
    %1376 = vst [vmem:[%s4 + $0x30] sm:$0xff] %v1366
    %1377 = vst [vmem:[%s4 + $0x38] sm:$0xff] %v1368
    // Predicated region
    $region26: #{botrgcn1_forward.1} parent=1 // pred_check
      _
    $region27: #{botrgcn1_forward.1} parent=1 // pred_check_branch
      %1379 = sbr.rel (0) target = $region29
    $region28: #{botrgcn1_forward.1} parent=1 // pred_region
      _
    $region29: #{botrgcn1_forward.1} parent=1 // pred_fallthru
      _
    // Predicated region
    $region30: #{botrgcn1_forward.1} parent=1 // pred_check
      _
    $region31: #{botrgcn1_forward.1} parent=1 // pred_check_branch
      %1381 = sbr.rel (0) target = $region33
    $region32: #{botrgcn1_forward.1} parent=1 // pred_region
      _
    $region33: #{botrgcn1_forward.1} parent=1 // pred_fallthru
      _
    %1382 = vsyncpa [#allocation3], 1
    %1383 = vsyncpa [#allocation5], 1

</llo_original>
